<compile_context>
chip_gen: v6e
topology: v6e:2x2x1
jax: 0.10.0
libtpu: 0.0.40
codegen_flags: <defaults>
</compile_context>

<pallas_src>
import functools

import jax
import jax.numpy as jnp
from jax import lax
from jax.experimental import pallas as pl
from jax.experimental.pallas import tpu as pltpu


def _vmem_capacity_bytes() -> int:
    """Physical VMEM of the local TPU; conservative (v7x, 64 MiB) fallback."""
    try:
        return int(pltpu.get_tpu_info().vmem_capacity_bytes)
    except Exception:
        return 64 * 1024 * 1024


def _pick_c_tile(c: int) -> int:
    """Channel (sublane) tile: a multiple of 8 when C allows, else the full C
    (a block dim equal to the array dim is always legal, e.g. the toy C=4).
    For C < 8 some sublane padding remains; folding N/HW into the sublane axis
    would avoid it but requires a relayout, so it is not done here."""
    if c % 8 != 0:
        return c
    for cand in (32, 16, 8):
        if c % cand == 0:
            return cand
    return 8


def _pick_hw_tile(hw: int, n: int, c_tile: int, itemsize: int, vmem_cap: int) -> int:
    """Lane tile for the streaming path: a multiple of 128 dividing HW, as wide
    as possible (targeting >=512 lanes) while double-buffered in/out tiles plus
    f32 temps stay well inside VMEM."""
    if hw % 128 != 0:
        return hw  # full rows: block dim == array dim is always legal
    budget = vmem_cap // 2
    best, cand = 128, 128
    while cand <= hw and cand <= 2048:
        if hw % cand == 0 and n * c_tile * cand * (4 * itemsize + 8) <= budget:
            best = cand
        cand += 128
    return best


def _bn_fused_kernel(x_ref, gamma_ref, beta_ref, o_ref, stats_ref, *, eps, m):
    """Single-visit kernel: full (N, C_tile, H*W) rows resident in VMEM.

    x_ref:       (N, Ct, HW)  input dtype
    gamma/beta:  (1, Ct, 1)   f32
    o_ref:       (N, Ct, HW)  input dtype
    stats_ref:   (Ct, 2)      f32   (col 0 = mean, col 1 = unbiased var)
    """
    x = x_ref[...].astype(jnp.float32)
    # One-pass sum / sum-of-squares (f32): lane reduce first (XLU), then the
    # cheap reduce across the leading batch dim (VPU adds).
    s = jnp.sum(jnp.sum(x, axis=2, keepdims=True), axis=0, keepdims=True)     # (1,Ct,1)
    ss = jnp.sum(jnp.sum(x * x, axis=2, keepdims=True), axis=0, keepdims=True)
    mean = s * (1.0 / m)
    # Unbiased variance (torch.Tensor.var default) -- matches the module.
    var = (ss - s * mean) * (1.0 / (m - 1.0))
    inv_std = lax.rsqrt(var + eps)                  # EUP slot, ~free next to VPU work
    scale = gamma_ref[...] * inv_std                # (1, Ct, 1)
    shift = beta_ref[...] - mean * scale
    o_ref[...] = (x * scale + shift).astype(o_ref.dtype)
    stats_ref[:, 0:1] = mean[0]
    stats_ref[:, 1:2] = var[0]


def _bn_stats_kernel(x_ref, stats_ref, *, m):
    """Streaming statistics pass.

    grid = (C tiles ["parallel"], HW tiles ["arbitrary", last]).  stats_ref maps
    to the same (Ct, 2) block for every HW step, so it stays resident in VMEM
    and acts as the f32 (sum, sumsq) accumulator; it is converted in place to
    (mean, unbiased var) on the final HW step.
    """
    hi = pl.program_id(1)

    @pl.when(hi == 0)
    def _init():
        stats_ref[...] = jnp.zeros_like(stats_ref)

    x = x_ref[...].astype(jnp.float32)                                         # (N,Ct,HWt)
    ps = jnp.sum(jnp.sum(x, axis=2, keepdims=True), axis=0, keepdims=True)[0]  # (Ct,1)
    pss = jnp.sum(jnp.sum(x * x, axis=2, keepdims=True), axis=0, keepdims=True)[0]
    stats_ref[:, 0:1] = stats_ref[:, 0:1] + ps
    stats_ref[:, 1:2] = stats_ref[:, 1:2] + pss

    @pl.when(hi == pl.num_programs(1) - 1)
    def _finalize():
        s = stats_ref[:, 0:1]
        ss = stats_ref[:, 1:2]
        mean = s * (1.0 / m)
        var = (ss - s * mean) * (1.0 / (m - 1.0))   # unbiased; nan for m == 1
        stats_ref[:, 0:1] = mean
        stats_ref[:, 1:2] = var


def _bn_apply_kernel(x_ref, scale_ref, shift_ref, o_ref):
    """Elementwise normalize: y = x * scale + shift (per channel)."""
    x = x_ref[...].astype(jnp.float32)
    o_ref[...] = (x * scale_ref[...] + shift_ref[...]).astype(o_ref.dtype)


def batchnorm_forward(x_nchw, gamma, beta, running_mean, running_var, *,
                      momentum=0.1, eps=1e-5, force_two_pass=False, hw_tile=None):
    """Training-mode BatchNorm forward matching the reference module.

    Returns (y_nchw, new_running_mean, new_running_variance)."""
    n, c, h, w = x_nchw.shape
    hw = h * w
    m = n * hw

    # Free layout change: NCHW -> (N, C, H*W).  No transpose, no dtype copy.
    x3 = x_nchw.reshape(n, c, hw)
    gamma3 = gamma.reshape(1, c, 1).astype(jnp.float32)
    beta3 = beta.reshape(1, c, 1).astype(jnp.float32)

    itemsize = x_nchw.dtype.itemsize
    vmem_cap = _vmem_capacity_bytes()
    vmem_limit = int(vmem_cap * 0.85)

    c_tile = _pick_c_tile(c)
    nct = c // c_tile

    # Fused-path footprint: double-buffered x and y tiles + ~2 f32 working copies.
    fused_est = n * c_tile * hw * (4 * itemsize + 8)
    use_fused = (not force_two_pass) and fused_est <= int(vmem_cap * 0.6)

    if use_fused:
        kernel = functools.partial(_bn_fused_kernel, eps=float(eps), m=float(m))
        y3, stats = pl.pallas_call(
            kernel,
            grid=(nct,),
            in_specs=[
                pl.BlockSpec((n, c_tile, hw), lambda ci: (0, ci, 0)),
                pl.BlockSpec((1, c_tile, 1), lambda ci: (0, ci, 0)),
                pl.BlockSpec((1, c_tile, 1), lambda ci: (0, ci, 0)),
            ],
            out_specs=(
                pl.BlockSpec((n, c_tile, hw), lambda ci: (0, ci, 0)),
                pl.BlockSpec((c_tile, 2), lambda ci: (ci, 0)),
            ),
            out_shape=(
                jax.ShapeDtypeStruct((n, c, hw), x_nchw.dtype),
                jax.ShapeDtypeStruct((c, 2), jnp.float32),
            ),
            compiler_params=pltpu.CompilerParams(
                dimension_semantics=("parallel",),
                vmem_limit_bytes=vmem_limit),
        )(x3, gamma3, beta3)
        mean_c = stats[:, 0]
        var_c = stats[:, 1]
    else:
        tile_hw = hw_tile if hw_tile is not None else _pick_hw_tile(
            hw, n, c_tile, itemsize, vmem_cap)
        assert hw % tile_hw == 0, "lane tile must divide H*W"
        nhw = hw // tile_hw

        # Pass 1: per-channel (sum, sumsq) accumulated across lane tiles.
        stats = pl.pallas_call(
            functools.partial(_bn_stats_kernel, m=float(m)),
            grid=(nct, nhw),
            in_specs=[pl.BlockSpec((n, c_tile, tile_hw),
                                   lambda ci, hi: (0, ci, hi))],
            out_specs=pl.BlockSpec((c_tile, 2), lambda ci, hi: (ci, 0)),
            out_shape=jax.ShapeDtypeStruct((c, 2), jnp.float32),
            compiler_params=pltpu.CompilerParams(
                dimension_semantics=("parallel", "arbitrary"),
                vmem_limit_bytes=vmem_limit),
        )(x3)
        mean_c = stats[:, 0]
        var_c = stats[:, 1]

        # Fold gamma/beta/mean/var into per-channel scale & shift (O(C) work).
        g32 = gamma.astype(jnp.float32)
        inv_std = lax.rsqrt(var_c + eps)
        scale3 = (g32 * inv_std).reshape(1, c, 1)
        shift3 = (beta.astype(jnp.float32) - mean_c * g32 * inv_std).reshape(1, c, 1)

        # Pass 2: elementwise normalize, fully parallel tiles.
        y3 = pl.pallas_call(
            _bn_apply_kernel,
            grid=(nct, nhw),
            in_specs=[
                pl.BlockSpec((n, c_tile, tile_hw), lambda ci, hi: (0, ci, hi)),
                pl.BlockSpec((1, c_tile, 1), lambda ci, hi: (0, ci, 0)),
                pl.BlockSpec((1, c_tile, 1), lambda ci, hi: (0, ci, 0)),
            ],
            out_specs=pl.BlockSpec((n, c_tile, tile_hw),
                                   lambda ci, hi: (0, ci, hi)),
            out_shape=jax.ShapeDtypeStruct((n, c, hw), x_nchw.dtype),
            compiler_params=pltpu.CompilerParams(
                dimension_semantics=("parallel", "parallel"),
                vmem_limit_bytes=vmem_limit),
        )(x3, scale3, shift3)

    y_nchw = y3.reshape(n, c, h, w)   # free reshape back to NCHW

    # Running-buffer update (O(C), plain JAX).  The module uses the *unbiased*
    # batch variance here as well.
    new_running_mean = ((1.0 - momentum) * running_mean
                        + momentum * mean_c.astype(running_mean.dtype))
    new_running_var = ((1.0 - momentum) * running_var
                       + momentum * var_c.astype(running_var.dtype))
    return y_nchw, new_running_mean, new_running_var


if __name__ == "__main__":
    key = jax.random.PRNGKey(0)
    N, C, H, W = 2, 4, 16, 16
    x = jax.random.normal(key, (N, C, H, W), dtype=jnp.float32)

    # Deterministic parameter/buffer init matching the nn.Module __init__:
    gamma = jnp.ones((C,), jnp.float32)
    beta = jnp.zeros((C,), jnp.float32)
    running_mean = jnp.zeros((C,), jnp.float32)
    running_var = jnp.ones((C,), jnp.float32)

    # Pure-JAX reference of the PyTorch module's training-mode forward.
    mean_ref = x.mean(axis=(0, 2, 3), keepdims=True)
    var_ref = x.var(axis=(0, 2, 3), keepdims=True, ddof=1)   # torch.var default (unbiased)
    y_ref = (x - mean_ref) / jnp.sqrt(var_ref + 1e-5)
    y_ref = gamma.reshape(1, C, 1, 1) * y_ref + beta.reshape(1, C, 1, 1)
    rm_ref = 0.9 * running_mean + 0.1 * mean_ref.reshape(C)
    rv_ref = 0.9 * running_var + 0.1 * var_ref.reshape(C)

    # 1) fused single-visit path (per-channel rows resident in VMEM).
    y1, rm1, rv1 = batchnorm_forward(x, gamma, beta, running_mean, running_var,
                                     momentum=0.1, eps=1e-5)
    # 2) streaming two-pass path, forced with a 128-lane tile so the resident
    #    (sum, sumsq) accumulation across multiple grid steps is exercised too.
    y2, rm2, rv2 = batchnorm_forward(x, gamma, beta, running_mean, running_var,
                                     momentum=0.1, eps=1e-5,
                                     force_two_pass=True, hw_tile=128)
    jax.block_until_ready((y1, rm1, rv1, y2, rm2, rv2))

    for (y, rm, rv) in ((y1, rm1, rv1), (y2, rm2, rv2)):
        assert jnp.allclose(y, y_ref, atol=1e-4, rtol=1e-4), "y mismatch"
        assert jnp.allclose(rm, rm_ref, atol=1e-5, rtol=1e-5), "running_mean mismatch"
        assert jnp.allclose(rv, rv_ref, atol=1e-5, rtol=1e-5), "running_variance mismatch"

    print("KERNEL_OK")
</pallas_src>

<mosaic_0001>
module attributes {stable_mosaic.version = 11 : i64} {
  func.func @_bn_fused_kernel(%arg0: i32, %arg1: memref<2x4x256xf32, #tpu.memory_space<vmem>>, %arg2: memref<1x4x1xf32, #tpu.memory_space<vmem>>, %arg3: memref<1x4x1xf32, #tpu.memory_space<vmem>>, %arg4: memref<2x4x256xf32, #tpu.memory_space<vmem>>, %arg5: memref<4x2xf32, #tpu.memory_space<vmem>>) attributes {dimension_semantics = [#tpu.dimension_semantics<parallel>], iteration_bounds = array<i64: 1>, scalar_prefetch = 0 : i64, scratch_operands = 0 : i64, tpu.core_type = #tpu.core_type<tc>, window_params = [{transform_indices = @transform_0, window_bounds = array<i64: 2, 4, 256>}, {transform_indices = @transform_1, window_bounds = array<i64: 1, 4, 1>}, {transform_indices = @transform_2, window_bounds = array<i64: 1, 4, 1>}, {transform_indices = @transform_3, window_bounds = array<i64: 2, 4, 256>}, {transform_indices = @transform_4, window_bounds = array<i64: 4, 2>}]} {
    %c0 = arith.constant 0 : index
    %c0_0 = arith.constant 0 : index
    %c0_1 = arith.constant 0 : index
    %0 = vector.load %arg1[%c0, %c0_0, %c0_1] : memref<2x4x256xf32, #tpu.memory_space<vmem>>, vector<2x4x256xf32>
    %cst = arith.constant dense<0.000000e+00> : vector<2x4xf32>
    %1 = vector.multi_reduction <add>, %0, %cst [2] : vector<2x4x256xf32> to vector<2x4xf32>
    %2 = vector.shape_cast %1 : vector<2x4xf32> to vector<2x4x1xf32>
    %cst_2 = arith.constant dense<0.000000e+00> : vector<4x1xf32>
    %3 = vector.multi_reduction <add>, %2, %cst_2 [0] : vector<2x4x1xf32> to vector<4x1xf32>
    %4 = vector.shape_cast %3 : vector<4x1xf32> to vector<1x4x1xf32>
    %5 = arith.mulf %0, %0 : vector<2x4x256xf32>
    %cst_3 = arith.constant dense<0.000000e+00> : vector<2x4xf32>
    %6 = vector.multi_reduction <add>, %5, %cst_3 [2] : vector<2x4x256xf32> to vector<2x4xf32>
    %7 = vector.shape_cast %6 : vector<2x4xf32> to vector<2x4x1xf32>
    %cst_4 = arith.constant dense<0.000000e+00> : vector<4x1xf32>
    %8 = vector.multi_reduction <add>, %7, %cst_4 [0] : vector<2x4x1xf32> to vector<4x1xf32>
    %9 = vector.shape_cast %8 : vector<4x1xf32> to vector<1x4x1xf32>
    %cst_5 = arith.constant 0.001953125 : f32
    %10 = vector.broadcast %cst_5 : f32 to vector<1x4x1xf32>
    %11 = arith.mulf %4, %10 : vector<1x4x1xf32>
    %12 = arith.mulf %4, %11 : vector<1x4x1xf32>
    %13 = arith.subf %9, %12 : vector<1x4x1xf32>
    %cst_6 = arith.constant 0.00195694715 : f32
    %14 = vector.broadcast %cst_6 : f32 to vector<1x4x1xf32>
    %15 = arith.mulf %13, %14 : vector<1x4x1xf32>
    %cst_7 = arith.constant 9.99999974E-6 : f32
    %16 = vector.broadcast %cst_7 : f32 to vector<1x4x1xf32>
    %17 = arith.addf %15, %16 : vector<1x4x1xf32>
    %18 = math.rsqrt %17 : vector<1x4x1xf32>
    %c0_8 = arith.constant 0 : index
    %c0_9 = arith.constant 0 : index
    %c0_10 = arith.constant 0 : index
    %19 = vector.load %arg2[%c0_8, %c0_9, %c0_10] : memref<1x4x1xf32, #tpu.memory_space<vmem>>, vector<1x4x1xf32>
    %20 = arith.mulf %19, %18 : vector<1x4x1xf32>
    %c0_11 = arith.constant 0 : index
    %c0_12 = arith.constant 0 : index
    %c0_13 = arith.constant 0 : index
    %21 = vector.load %arg3[%c0_11, %c0_12, %c0_13] : memref<1x4x1xf32, #tpu.memory_space<vmem>>, vector<1x4x1xf32>
    %22 = arith.mulf %11, %20 : vector<1x4x1xf32>
    %23 = arith.subf %21, %22 : vector<1x4x1xf32>
    %24 = vector.broadcast %20 : vector<1x4x1xf32> to vector<2x4x256xf32>
    %25 = arith.mulf %0, %24 : vector<2x4x256xf32>
    %26 = vector.broadcast %23 : vector<1x4x1xf32> to vector<2x4x256xf32>
    %27 = arith.addf %25, %26 : vector<2x4x256xf32>
    %c0_14 = arith.constant 0 : index
    %c0_15 = arith.constant 0 : index
    %c0_16 = arith.constant 0 : index
    %28 = vector.load %arg4[%c0_14, %c0_15, %c0_16] : memref<2x4x256xf32, #tpu.memory_space<vmem>>, vector<2x4x256xf32>
    tpu.vector_store %arg4[%c0_14, %c0_15, %c0_16], %27 {strides = array<i32>} : memref<2x4x256xf32, #tpu.memory_space<vmem>>, vector<2x4x256xf32>,
    %29 = vector.shape_cast %11 : vector<1x4x1xf32> to vector<4x1xf32>
    %c0_17 = arith.constant 0 : index
    %c0_18 = arith.constant 0 : index
    %30 = vector.load %arg5[%c0_17, %c0_18] : memref<4x2xf32, #tpu.memory_space<vmem>>, vector<4x1xf32>
    tpu.vector_store %arg5[%c0_17, %c0_18], %29 {strides = array<i32>} : memref<4x2xf32, #tpu.memory_space<vmem>>, vector<4x1xf32>,
    %31 = vector.shape_cast %15 : vector<1x4x1xf32> to vector<4x1xf32>
    %c0_19 = arith.constant 0 : index
    %c1 = arith.constant 1 : index
    %32 = vector.load %arg5[%c0_19, %c1] : memref<4x2xf32, #tpu.memory_space<vmem>>, vector<4x1xf32>
    tpu.vector_store %arg5[%c0_19, %c1], %31 {strides = array<i32>} : memref<4x2xf32, #tpu.memory_space<vmem>>, vector<4x1xf32>,
    return
  }
  func.func @transform_0(%arg0: i32) -> (i32, i32, i32) {
    %c0_i32 = arith.constant 0 : i32
    %c0_i32_0 = arith.constant 0 : i32
    %c0_i32_1 = arith.constant 0 : i32
    return %c0_i32, %arg0, %c0_i32_0 : i32, i32, i32
  }
  func.func @transform_1(%arg0: i32) -> (i32, i32, i32) {
    %c0_i32 = arith.constant 0 : i32
    %c0_i32_0 = arith.constant 0 : i32
    %c0_i32_1 = arith.constant 0 : i32
    return %c0_i32, %arg0, %c0_i32_0 : i32, i32, i32
  }
  func.func @transform_2(%arg0: i32) -> (i32, i32, i32) {
    %c0_i32 = arith.constant 0 : i32
    %c0_i32_0 = arith.constant 0 : i32
    %c0_i32_1 = arith.constant 0 : i32
    return %c0_i32, %arg0, %c0_i32_0 : i32, i32, i32
  }
  func.func @transform_3(%arg0: i32) -> (i32, i32, i32) {
    %c0_i32 = arith.constant 0 : i32
    %c0_i32_0 = arith.constant 0 : i32
    %c0_i32_1 = arith.constant 0 : i32
    return %c0_i32, %arg0, %c0_i32_0 : i32, i32, i32
  }
  func.func @transform_4(%arg0: i32) -> (i32, i32) {
    %c0_i32 = arith.constant 0 : i32
    %c0_i32_0 = arith.constant 0 : i32
    return %arg0, %c0_i32 : i32, i32
  }
}

</mosaic_0001>

<llo_original>
// kernel: tpu_custom_call.1
$region0: #{tpu_custom_call.1}
  #allocation0 [shape = 'u32[]', space=smem, size = 0x4, offset = 0x4, fixed_abs, tag = 'smem constant byte address 0x4 - core index']
  #allocation1 [shape = 'u32[144,128]{1,0:T(1,128)}', space=vmem, size = 0x12000, scoped, tag = 'internal scratch']
  %s0 = inlined_call_operand.hbm [shape: f32[2,4,256], index: 0, kind: input, shape index: {}]
  %s1 = inlined_call_operand.vmem [shape: f32[1,4,1], index: 1, kind: input, shape index: {}]
  %s2 = inlined_call_operand.vmem [shape: f32[1,4,1], index: 2, kind: input, shape index: {}]
  %s3 = inlined_call_operand.hbm [shape: f32[2,4,256], index: 3, kind: output, shape index: {0}]
  %s4 = inlined_call_operand.vmem [shape: f32[4,2], index: 4, kind: output, shape index: {1}]
  %5 = xla_tuple %s3, %s4
  %s6 = sld [smem:[#allocation0]]
  $region34: #{tpu_custom_call.1} parent=0
    _
  %s8 = ssub.s32 1, %s6
  %s9 = scalar_select 0, %s8, %s6
  $region1: #{tpu_custom_call.1} parent=0
    #allocation2 [shape = 'u8[8192]{0}', space=vmem, size = 0x2000, scoped, tag = 'input window, operand 0, single buffered']
    #allocation3 [shape = 's32[1]{0}', space=sflag, size = 0x4, scoped, tag = 'scoped memory for tpu_custom_call.1']
    #allocation4 [shape = 's32[1]{0}', space=sflag, size = 0x4, scoped, tag = 'scoped memory for tpu_custom_call.1']
    #allocation5 [shape = 'u8[8192]{0}', space=vmem, size = 0x2000, scoped, tag = 'output window, operand 0, single buffered']
    %10 = vsyncpa [#allocation3], 0
    %11 = vsyncpa [#allocation4], 0
    // Predicated region
    $region2: #{tpu_custom_call.1} parent=1 // pred_check
      _
    $region3: #{tpu_custom_call.1} parent=1 // pred_check_branch
      %13 = sbr.rel (0) target = $region5
    $region4: #{tpu_custom_call.1} parent=1 // pred_region
      %s15 = ssub.s32 256, 256
      %16 = vsyncadd [#allocation3], %s15
      %s17 = sshll.u32 [#allocation2], 4
      %s18 = int_to_ptr.vmem [resolvable:$true] %s17
      %23 = dma.hbm_to_vmem [thread:$0]  %s0, 256, %s18, [#allocation3], 128, 128, 8
    $region5: #{tpu_custom_call.1} parent=1 // pred_fallthru
      _
    // Predicated region
    $region6: #{tpu_custom_call.1} parent=1 // pred_check
      _
    $region7: #{tpu_custom_call.1} parent=1 // pred_check_branch
      %25 = sbr.rel (0) target = $region9
    $region8: #{tpu_custom_call.1} parent=1 // pred_region
      _
    $region9: #{tpu_custom_call.1} parent=1 // pred_fallthru
      _
    // Predicated region
    $region10: #{tpu_custom_call.1} parent=1 // pred_check
      _
    $region11: #{tpu_custom_call.1} parent=1 // pred_check_branch
      %27 = sbr.rel (0) target = $region13
    $region12: #{tpu_custom_call.1} parent=1 // pred_region
      _
    $region13: #{tpu_custom_call.1} parent=1 // pred_fallthru
      _
    // Predicated region
    $region14: #{tpu_custom_call.1} parent=1 // pred_check
      _
    $region15: #{tpu_custom_call.1} parent=1 // pred_check_branch
      %29 = sbr.rel (0) target = $region17
    $region16: #{tpu_custom_call.1} parent=1 // pred_region
      %30 = dma.done [#allocation3], 256
    $region17: #{tpu_custom_call.1} parent=1 // pred_fallthru
      _
    %v31 = vld [vmem:[#allocation2] sm:$0xff]
    %v32 = vld [vmem:[#allocation2 + $0x8] sm:$0xff]
    %v35 = vcombine.high %v31, %v31
    %v36 = vcombine.high %v32, %v32
    %vm39 = vcmask 1043456
    %v40 = vsel %vm39, %v31, 0.0
    %v41 = vsel %vm39, %v35, 0.0
    %v42 = vadd.f32 %v40, %v41
    %43 = vadd.xlane.f32.xlu0 %v42
    %v44 = vpop.xlane.xlu0 %43
    %v45 = vsel %vm39, %v32, 0.0
    %v46 = vsel %vm39, %v36, 0.0
    %v47 = vadd.f32 %v45, %v46
    %48 = vadd.xlane.f32.xlu0 %v47
    %v49 = vpop.xlane.xlu0 %48
    %v50 = vsel %vm39, %v44, 0.0
    %v51 = vsel %vm39, %v49, 0.0
    %v52 = vadd.f32 %v50, %v51
    %v53 = vmul.f32 %v31, %v31
    %v54 = vmul.f32 %v32, %v32
    %v57 = vcombine.high %v53, %v53
    %v58 = vcombine.high %v54, %v54
    %v61 = vsel %vm39, %v53, 0.0
    %v62 = vsel %vm39, %v57, 0.0
    %v63 = vadd.f32 %v61, %v62
    %64 = vadd.xlane.f32.xlu0 %v63
    %v65 = vpop.xlane.xlu0 %64
    %v66 = vsel %vm39, %v54, 0.0
    %v67 = vsel %vm39, %v58, 0.0
    %v68 = vadd.f32 %v66, %v67
    %69 = vadd.xlane.f32.xlu0 %v68
    %v70 = vpop.xlane.xlu0 %69
    %v71 = vsel %vm39, %v65, 0.0
    %v72 = vsel %vm39, %v70, 0.0
    %v73 = vadd.f32 %v71, %v72
    %v74 = vmul.f32 %v52, 0.001953125
    %v75 = vmul.f32 %v52, %v74
    %v76 = vsub.f32 %v73, %v75
    %v77 = vmul.f32 %v76, 0.0019569471
    %v78 = vadd.f32 %v77, 1e-05
    %v79 = vrsqrt.pop %v78
    %v80 = vld [vmem:[%s1] sm:$0xf]
    %v81 = vmul.f32 %v80, %v79
    %v82 = vld [vmem:[%s2] sm:$0xf]
    %v83 = vmul.f32 %v74, %v81
    %v84 = vsub.f32 %v82, %v83
    %86 = vset.pattern.permute.xlu0 0
    %87 = vperm.xlu0 %86, %v81
    %v88 = vpop.permute.xlu0 %87
    %v90 = vunpack.c.l.s4 839922192
    %v91 = vunpack.c.0.s8 %v90
    %v92 = vlaneseq
    %v93 = vshrl.u32 %v92, 7
    %v94 = vsub.s32 %v91, %v93
    %v95 = vrot.slane %v88, %v94
    %v97 = vmul.f32 %v31, %v95
    %v98 = vmul.f32 %v32, %v95
    %100 = vset.pattern.permute.xlu0 0
    %101 = vperm.xlu0 %100, %v84
    %v102 = vpop.permute.xlu0 %101
    %v104 = vunpack.c.l.s4 839922192
    %v105 = vunpack.c.0.s8 %v104
    %v106 = vlaneseq
    %v107 = vshrl.u32 %v106, 7
    %v108 = vsub.s32 %v105, %v107
    %v109 = vrot.slane %v102, %v108
    %v111 = vadd.f32 %v97, %v109
    %v112 = vadd.f32 %v98, %v109
    %113 = vst [vmem:[#allocation5] sm:$0xff] %v111
    %114 = vst [vmem:[#allocation5 + $0x8] sm:$0xff] %v112
    %vm115 = vcmask 3072
    %116 = vst.msk [vmem:[%s4] sm:$0xf] %vm115, %v74
    %vm117 = vcmask 11272
    %118 = vst.msk [vmem:[%s4] sm:$0xf] %vm117, %v77
    // Predicated region
    $region18: #{tpu_custom_call.1} parent=1 // pred_check
      _
    $region19: #{tpu_custom_call.1} parent=1 // pred_check_branch
      %120 = sbr.rel (0) target = $region21
    $region20: #{tpu_custom_call.1} parent=1 // pred_region
      %s122 = ssub.s32 256, 256
      %123 = vsyncadd [#allocation4], %s122
      %s124 = sshll.u32 [#allocation5], 4
      %s125 = int_to_ptr.vmem [resolvable:$true] %s124
      %130 = dma.vmem_to_hbm [thread:$0]  %s125, 256, %s3, [#allocation4], 128, 128, 8
    $region21: #{tpu_custom_call.1} parent=1 // pred_fallthru
      _
    // Predicated region
    $region22: #{tpu_custom_call.1} parent=1 // pred_check
      _
    $region23: #{tpu_custom_call.1} parent=1 // pred_check_branch
      %132 = sbr.rel (0) target = $region25
    $region24: #{tpu_custom_call.1} parent=1 // pred_region
      _
    $region25: #{tpu_custom_call.1} parent=1 // pred_fallthru
      _
    // Predicated region
    $region26: #{tpu_custom_call.1} parent=1 // pred_check
      _
    $region27: #{tpu_custom_call.1} parent=1 // pred_check_branch
      %134 = sbr.rel (0) target = $region29
    $region28: #{tpu_custom_call.1} parent=1 // pred_region
      %135 = dma.done [#allocation4], 256
    $region29: #{tpu_custom_call.1} parent=1 // pred_fallthru
      _
    // Predicated region
    $region30: #{tpu_custom_call.1} parent=1 // pred_check
      _
    $region31: #{tpu_custom_call.1} parent=1 // pred_check_branch
      %137 = sbr.rel (0) target = $region33
    $region32: #{tpu_custom_call.1} parent=1 // pred_region
      _
    $region33: #{tpu_custom_call.1} parent=1 // pred_fallthru
      _
    %138 = vsyncpa [#allocation3], 1
    %139 = vsyncpa [#allocation4], 1

</llo_original>
